<compile_context>
chip_gen: v6e
topology: v6e:2x2x1
jax: 0.10.0
libtpu: 0.0.40
codegen_flags: <defaults>
</compile_context>

<pallas_src>
import functools

import jax
import jax.numpy as jnp
from jax.experimental import pallas as pl
from jax.experimental.pallas import tpu as pltpu


def hybrid_kernel(hid_ref, num_ref,
                  wt_ref, bt_ref,
                  wn_ref, bn_ref,
                  wct_ref, wcn_ref, bc_ref,
                  out_ref, acc_ref,
                  *, inv_seq_len, n_numeric, fc_dim):
    s = pl.program_id(1)

    @pl.when(s == 0)
    def _init():
        acc_ref[...] = jnp.zeros_like(acc_ref)

    # f32 seq-sum accumulation of the bf16-streamed hidden-state tile.
    acc_ref[...] += jnp.sum(hid_ref[...].astype(jnp.float32), axis=1)

    @pl.when(s == pl.num_programs(1) - 1)
    def _finalize():
        # Mean pooling (normalization folded into the finalize step), f32.
        pooled = acc_ref[...] * inv_seq_len                      # (TB, H)

        # text_fc on the MXU: bf16 x bf16 -> f32 accumulate.
        text_feat = (jnp.dot(pooled.astype(jnp.bfloat16), wt_ref[...],
                             preferred_element_type=jnp.float32)
                     + bt_ref[...])                              # (TB, FC)

        # numeric_fc: K = n_numeric (tiny) -> VPU broadcast FMAs, skip the MXU.
        numeric = num_ref[...]                                   # (TB, F) f32
        wn = wn_ref[...]                                         # (F, FC) f32
        tb = numeric.shape[0]
        num_feat = jnp.broadcast_to(bn_ref[...], (tb, fc_dim)).astype(jnp.float32)
        for f in range(n_numeric):
            num_feat = num_feat + numeric[:, f:f + 1] * wn[f:f + 1, :]

        # classifier on concat([text, numeric]):
        #   cat @ Wc == text_feat @ Wc[:FC] + num_feat @ Wc[FC:]
        logits = (jnp.dot(text_feat.astype(jnp.bfloat16), wct_ref[...],
                          preferred_element_type=jnp.float32)
                  + jnp.dot(num_feat.astype(jnp.bfloat16), wcn_ref[...],
                            preferred_element_type=jnp.float32)
                  + bc_ref[...])                                 # (TB, L_pad)
        out_ref[...] = logits.astype(out_ref.dtype)


def _round_up(x, m):
    return ((x + m - 1) // m) * m


def _pick_batch_tile(batch, cap):
    """Largest divisor of `batch` that is <= cap and (a multiple of 8 or == batch)."""
    if batch <= cap:
        return batch
    for d in range(min(batch, cap), 7, -1):
        if batch % d == 0 and d % 8 == 0:
            return d
    return batch  # no usable divisor (e.g. prime batch): take the whole batch


def hybrid_forward(last_hidden_state, numeric_input, params):
    """params: W_text(H,FC), b_text(1,FC), W_num(F,FC), b_num(1,FC),
       W_cls split into W_cls_text(FC,L) / W_cls_num(FC,L), b_cls(1,L)."""
    B, S, H = last_hidden_state.shape
    F = numeric_input.shape[-1]
    FC = params["W_text"].shape[-1]
    L = params["b_cls"].shape[-1]

    # Lane-dense output: pad the label dim up to a multiple of 128 and slice
    # back after the call (avoids masked vst.msk on a few-lane store).
    L_pad = _round_up(L, 128)
    wct = jnp.pad(params["W_cls_text"], ((0, 0), (0, L_pad - L))).astype(jnp.bfloat16)
    wcn = jnp.pad(params["W_cls_num"], ((0, 0), (0, L_pad - L))).astype(jnp.bfloat16)
    bc = jnp.pad(params["b_cls"], ((0, 0), (0, L_pad - L)))
    wt = params["W_text"].astype(jnp.bfloat16)            # pre-cast: MXU eats bf16

    # Dominant HBM traffic is B*S*H: stream it in bf16, accumulate in f32.
    hid = last_hidden_state.astype(jnp.bfloat16)
    hid_isz = hid.dtype.itemsize

    # Per-generation VMEM budget (v5e/v6e: 128 MiB, v7x: 64 MiB per TensorCore).
    try:
        vmem_cap = int(pltpu.get_tpu_info().vmem_capacity_bytes)
    except Exception:
        vmem_cap = 64 << 20                                # v7x-safe fallback
    usable = min((vmem_cap * 3) // 4, 100 << 20)

    # Resident weight footprint (x2: BlockSpec double-buffers even constant blocks).
    w_bytes = (H * FC * 2 + FC * 4 + F * FC * 4 + FC * 4
               + 2 * FC * L_pad * 2 + L_pad * 4)

    # Batch tile: as large as possible (fills MXU rows, fewer grid steps), but
    # keep >= 2 batch tiles for realistic batches so v7x megacore uses both TCs.
    TB = _pick_batch_tile(B, 256)
    if B // TB == 1 and B >= 16:
        alt = _pick_batch_tile(B, max(B // 2, 8))
        if B // alt >= 2:
            TB = alt

    def _per_buffer_budget(tb):
        overhead = 2 * w_bytes + 2 * tb * F * 4 + 2 * tb * L_pad * 4 + tb * H * 4
        return min(max((usable - overhead) // 2, 0), 16 << 20)

    # Shrink TB if even an 8-row seq tile would not fit the double-buffer budget.
    per_buf = _per_buffer_budget(TB)
    while per_buf < 8 * TB * H * hid_isz and TB > 8:
        alt = _pick_batch_tile(B, TB // 2)
        if alt >= TB:
            break
        TB = alt
        per_buf = _per_buffer_budget(TB)

    # Seq tile: biggest multiple of 8 that fits the per-buffer budget (<= ~16 MiB).
    row_bytes = max(TB * H * hid_isz, 1)
    ts_cap = per_buf // row_bytes
    if ts_cap >= S:
        TS = S
        S_pad = S
    else:
        TS = max((ts_cap // 8) * 8, 8)
        S_pad = _round_up(S, TS)
        if S_pad != S:
            # Zero rows are harmless to the running sum; mean uses the true S.
            hid = jnp.pad(hid, ((0, 0), (0, S_pad - S), (0, 0)))

    grid = (B // TB, S_pad // TS)

    hid_tile_bytes = TB * TS * H * hid_isz
    need = (2 * hid_tile_bytes + 2 * w_bytes
            + 2 * TB * F * 4 + 2 * TB * L_pad * 4 + TB * H * 4
            + (4 << 20))                                    # pipelining headroom
    vmem_limit = int(min(max(need, 16 << 20), (vmem_cap * 85) // 100, 100 << 20))

    kernel = functools.partial(hybrid_kernel,
                               inv_seq_len=1.0 / S,
                               n_numeric=F,
                               fc_dim=FC)

    flops = int(2 * B * (H * FC + F * FC + 2 * FC * L_pad) + B * S * H)
    bytes_accessed = int(
        hid.size * hid_isz
        + numeric_input.size * numeric_input.dtype.itemsize
        + w_bytes
        + B * L_pad * 4)

    const = lambda b, s: (0, 0)  # weights stay VMEM-resident across the grid

    out_padded = pl.pallas_call(
        kernel,
        out_shape=jax.ShapeDtypeStruct((B, L_pad), jnp.float32),
        grid=grid,
        in_specs=[
            pl.BlockSpec((TB, TS, H), lambda b, s: (b, s, 0)),   # streamed hid (bf16)
            pl.BlockSpec((TB, F), lambda b, s: (b, 0)),          # numeric_input
            pl.BlockSpec((H, FC), const),                        # W_text (bf16)
            pl.BlockSpec((1, FC), const),                        # b_text
            pl.BlockSpec((F, FC), const),                        # W_num
            pl.BlockSpec((1, FC), const),                        # b_num
            pl.BlockSpec((FC, L_pad), const),                    # W_cls_text (bf16)
            pl.BlockSpec((FC, L_pad), const),                    # W_cls_num (bf16)
            pl.BlockSpec((1, L_pad), const),                     # b_cls
        ],
        out_specs=pl.BlockSpec((TB, L_pad), lambda b, s: (b, 0)),
        scratch_shapes=[pltpu.VMEM((TB, H), jnp.float32)],       # f32 seq-sum acc
        compiler_params=pltpu.CompilerParams(
            dimension_semantics=("parallel", "arbitrary"),
            vmem_limit_bytes=vmem_limit),
        cost_estimate=pl.CostEstimate(flops=flops, transcendentals=0,
                                      bytes_accessed=bytes_accessed),
    )(hid, numeric_input,
      wt, params["b_text"],
      params["W_num"], params["b_num"],
      wct, wcn, bc)

    return out_padded[:, :L]


def reference_forward(last_hidden_state, numeric_input, params):
    pooled = jnp.mean(last_hidden_state, axis=1)
    t = pooled @ params["W_text"] + params["b_text"]
    n = numeric_input @ params["W_num"] + params["b_num"]
    combined = jnp.concatenate([t, n], axis=1)
    W_cls = jnp.concatenate([params["W_cls_text"], params["W_cls_num"]], axis=0)
    return combined @ W_cls + params["b_cls"]


if __name__ == "__main__":
    # Small shapes implied by the forward:
    B, S, H = 2, 8, 32          # batch, seq len, transformer hidden size
    F = 3                       # num_numeric_features ('seconds','flag_closed','international')
    FC = 128                    # text_fc / numeric_fc output size
    L = 4                       # num_labels

    key = jax.random.PRNGKey(0)
    keys = jax.random.split(key, 8)

    # TODO(synk): pretrained transformer backbone not translatable; its output
    # last_hidden_state is synthesized as a deterministic random input instead.
    last_hidden_state = jax.random.normal(keys[0], (B, S, H), dtype=jnp.float32)
    numeric_input = jax.random.normal(keys[1], (B, F), dtype=jnp.float32)

    params = {
        "W_text":     0.05 * jax.random.normal(keys[2], (H, FC), dtype=jnp.float32),
        "b_text":     0.01 * jax.random.normal(keys[3], (1, FC), dtype=jnp.float32),
        "W_num":      0.05 * jax.random.normal(keys[4], (F, FC), dtype=jnp.float32),
        "b_num":      0.01 * jax.random.normal(keys[5], (1, FC), dtype=jnp.float32),
        "W_cls_text": 0.05 * jax.random.normal(keys[6], (FC, L), dtype=jnp.float32),
        "W_cls_num":  0.05 * jax.random.normal(keys[7], (FC, L), dtype=jnp.float32),
        "b_cls":      jnp.zeros((1, L), dtype=jnp.float32),
    }

    logits = hybrid_forward(last_hidden_state, numeric_input, params)
    jax.block_until_ready(logits)

    ref = reference_forward(last_hidden_state, numeric_input, params)
    assert logits.shape == (B, L)
    # bf16 hidden-state streaming + bf16 MXU inputs (f32 accumulation) ->
    # compare with a bf16-appropriate tolerance.
    assert jnp.allclose(logits, ref, atol=3e-2, rtol=3e-2), "mismatch vs reference"

    print("KERNEL_OK")
</pallas_src>

<mosaic_0001>
module attributes {stable_mosaic.version = 11 : i64} {
  func.func @hybrid_kernel(%arg0: i32, %arg1: i32, %arg2: memref<2x8x32xbf16, #tpu.memory_space<vmem>>, %arg3: memref<2x3xf32, #tpu.memory_space<vmem>>, %arg4: memref<32x128xbf16, #tpu.memory_space<vmem>>, %arg5: memref<1x128xf32, #tpu.memory_space<vmem>>, %arg6: memref<3x128xf32, #tpu.memory_space<vmem>>, %arg7: memref<1x128xf32, #tpu.memory_space<vmem>>, %arg8: memref<128x128xbf16, #tpu.memory_space<vmem>>, %arg9: memref<128x128xbf16, #tpu.memory_space<vmem>>, %arg10: memref<1x128xf32, #tpu.memory_space<vmem>>, %arg11: memref<2x128xf32, #tpu.memory_space<vmem>>, %arg12: memref<2x32xf32, #tpu.memory_space<vmem>>) attributes {dimension_semantics = [#tpu.dimension_semantics<parallel>, #tpu.dimension_semantics<arbitrary>], iteration_bounds = array<i64: 1, 1>, scalar_prefetch = 0 : i64, scratch_operands = 1 : i64, tpu.core_type = #tpu.core_type<tc>, window_params = [{transform_indices = @transform_0, window_bounds = array<i64: 2, 8, 32>}, {transform_indices = @transform_1, window_bounds = array<i64: 2, 3>}, {pipeline_mode = #tpu.pipeline_mode<synchronous>, transform_indices = @transform_2, window_bounds = array<i64: 32, 128>}, {pipeline_mode = #tpu.pipeline_mode<synchronous>, transform_indices = @transform_3, window_bounds = array<i64: 1, 128>}, {pipeline_mode = #tpu.pipeline_mode<synchronous>, transform_indices = @transform_4, window_bounds = array<i64: 3, 128>}, {pipeline_mode = #tpu.pipeline_mode<synchronous>, transform_indices = @transform_5, window_bounds = array<i64: 1, 128>}, {pipeline_mode = #tpu.pipeline_mode<synchronous>, transform_indices = @transform_6, window_bounds = array<i64: 128, 128>}, {pipeline_mode = #tpu.pipeline_mode<synchronous>, transform_indices = @transform_7, window_bounds = array<i64: 128, 128>}, {pipeline_mode = #tpu.pipeline_mode<synchronous>, transform_indices = @transform_8, window_bounds = array<i64: 1, 128>}, {transform_indices = @transform_9, window_bounds = array<i64: 2, 128>}]} {
    %c0_i32 = arith.constant 0 : i32
    %0 = arith.cmpi eq, %arg1, %c0_i32 : i32
    %1 = arith.extui %0 : i1 to i32
    %c0_i32_0 = arith.constant 0 : i32
    %2 = arith.cmpi ne, %1, %c0_i32_0 : i32
    scf.if %2 {
      %cst_9 = arith.constant 0.000000e+00 : f32
      %12 = vector.broadcast %cst_9 : f32 to vector<2x32xf32>
      %c0_10 = arith.constant 0 : index
      %c0_11 = arith.constant 0 : index
      %13 = vector.load %arg12[%c0_10, %c0_11] : memref<2x32xf32, #tpu.memory_space<vmem>>, vector<2x32xf32>
      tpu.vector_store %arg12[%c0_10, %c0_11], %12 {strides = array<i32>} : memref<2x32xf32, #tpu.memory_space<vmem>>, vector<2x32xf32>,
    } else {
    }
    %c0 = arith.constant 0 : index
    %c0_1 = arith.constant 0 : index
    %3 = vector.load %arg12[%c0, %c0_1] : memref<2x32xf32, #tpu.memory_space<vmem>>, vector<2x32xf32>
    %c0_2 = arith.constant 0 : index
    %c0_3 = arith.constant 0 : index
    %c0_4 = arith.constant 0 : index
    %4 = vector.load %arg2[%c0_2, %c0_3, %c0_4] : memref<2x8x32xbf16, #tpu.memory_space<vmem>>, vector<2x8x32xbf16>
    %5 = arith.extf %4 : vector<2x8x32xbf16> to vector<2x8x32xf32>
    %cst = arith.constant dense<0.000000e+00> : vector<2x32xf32>
    %6 = vector.multi_reduction <add>, %5, %cst [1] : vector<2x8x32xf32> to vector<2x32xf32>
    %7 = arith.addf %3, %6 : vector<2x32xf32>
    %c0_5 = arith.constant 0 : index
    %c0_6 = arith.constant 0 : index
    %8 = vector.load %arg12[%c0_5, %c0_6] : memref<2x32xf32, #tpu.memory_space<vmem>>, vector<2x32xf32>
    tpu.vector_store %arg12[%c0_5, %c0_6], %7 {strides = array<i32>} : memref<2x32xf32, #tpu.memory_space<vmem>>, vector<2x32xf32>,
    %c0_i32_7 = arith.constant 0 : i32
    %9 = arith.cmpi eq, %arg1, %c0_i32_7 : i32
    %10 = arith.extui %9 : i1 to i32
    %c0_i32_8 = arith.constant 0 : i32
    %11 = arith.cmpi ne, %10, %c0_i32_8 : i32
    scf.if %11 {
      %c0_9 = arith.constant 0 : index
      %c0_10 = arith.constant 0 : index
      %12 = vector.load %arg12[%c0_9, %c0_10] : memref<2x32xf32, #tpu.memory_space<vmem>>, vector<2x32xf32>
      %cst_11 = arith.constant 1.250000e-01 : f32
      %13 = vector.broadcast %cst_11 : f32 to vector<2x32xf32>
      %14 = arith.mulf %12, %13 : vector<2x32xf32>
      %15 = arith.truncf %14 : vector<2x32xf32> to vector<2x32xbf16>
      %c0_12 = arith.constant 0 : index
      %c0_13 = arith.constant 0 : index
      %16 = vector.load %arg4[%c0_12, %c0_13] : memref<32x128xbf16, #tpu.memory_space<vmem>>, vector<32x128xbf16>
      %cst_14 = arith.constant dense<0.000000e+00> : vector<2x128xf32>
      %17 = tpu.matmul %15, %16, %cst_14 {dimension_numbers = #tpu.dot_dimension_numbers<[1], [0], [0], [1], [0, 0, 1, 1], [], []>} : vector<2x32xbf16>, vector<32x128xbf16>, vector<2x128xf32> -> vector<2x128xf32>
      %c0_15 = arith.constant 0 : index
      %c0_16 = arith.constant 0 : index
      %18 = vector.load %arg5[%c0_15, %c0_16] : memref<1x128xf32, #tpu.memory_space<vmem>>, vector<1x128xf32>
      %19 = vector.broadcast %18 : vector<1x128xf32> to vector<2x128xf32>
      %20 = arith.addf %17, %19 : vector<2x128xf32>
      %c0_17 = arith.constant 0 : index
      %c0_18 = arith.constant 0 : index
      %21 = vector.load %arg3[%c0_17, %c0_18] : memref<2x3xf32, #tpu.memory_space<vmem>>, vector<2x3xf32>
      %c0_19 = arith.constant 0 : index
      %c0_20 = arith.constant 0 : index
      %22 = vector.load %arg6[%c0_19, %c0_20] : memref<3x128xf32, #tpu.memory_space<vmem>>, vector<3x128xf32>
      %c0_21 = arith.constant 0 : index
      %c0_22 = arith.constant 0 : index
      %23 = vector.load %arg7[%c0_21, %c0_22] : memref<1x128xf32, #tpu.memory_space<vmem>>, vector<1x128xf32>
      %24 = vector.shape_cast %23 : vector<1x128xf32> to vector<1x128xf32>
      %25 = vector.broadcast %24 : vector<1x128xf32> to vector<2x128xf32>
      %26 = vector.extract_strided_slice %21 {offsets = [0, 0], sizes = [2, 1], strides = [1, 1]} : vector<2x3xf32> to vector<2x1xf32>
      %27 = vector.extract_strided_slice %22 {offsets = [0, 0], sizes = [1, 128], strides = [1, 1]} : vector<3x128xf32> to vector<1x128xf32>
      %28 = vector.broadcast %26 : vector<2x1xf32> to vector<2x128xf32>
      %29 = vector.broadcast %27 : vector<1x128xf32> to vector<2x128xf32>
      %30 = arith.mulf %28, %29 : vector<2x128xf32>
      %31 = arith.addf %25, %30 : vector<2x128xf32>
      %32 = vector.extract_strided_slice %21 {offsets = [0, 1], sizes = [2, 1], strides = [1, 1]} : vector<2x3xf32> to vector<2x1xf32>
      %33 = vector.extract_strided_slice %22 {offsets = [1, 0], sizes = [1, 128], strides = [1, 1]} : vector<3x128xf32> to vector<1x128xf32>
      %34 = vector.broadcast %32 : vector<2x1xf32> to vector<2x128xf32>
      %35 = vector.broadcast %33 : vector<1x128xf32> to vector<2x128xf32>
      %36 = arith.mulf %34, %35 : vector<2x128xf32>
      %37 = arith.addf %31, %36 : vector<2x128xf32>
      %38 = vector.extract_strided_slice %21 {offsets = [0, 2], sizes = [2, 1], strides = [1, 1]} : vector<2x3xf32> to vector<2x1xf32>
      %39 = vector.extract_strided_slice %22 {offsets = [2, 0], sizes = [1, 128], strides = [1, 1]} : vector<3x128xf32> to vector<1x128xf32>
      %40 = vector.broadcast %38 : vector<2x1xf32> to vector<2x128xf32>
      %41 = vector.broadcast %39 : vector<1x128xf32> to vector<2x128xf32>
      %42 = arith.mulf %40, %41 : vector<2x128xf32>
      %43 = arith.addf %37, %42 : vector<2x128xf32>
      %44 = arith.truncf %20 : vector<2x128xf32> to vector<2x128xbf16>
      %c0_23 = arith.constant 0 : index
      %c0_24 = arith.constant 0 : index
      %45 = vector.load %arg8[%c0_23, %c0_24] : memref<128x128xbf16, #tpu.memory_space<vmem>>, vector<128x128xbf16>
      %cst_25 = arith.constant dense<0.000000e+00> : vector<2x128xf32>
      %46 = tpu.matmul %44, %45, %cst_25 {dimension_numbers = #tpu.dot_dimension_numbers<[1], [0], [0], [1], [0, 0, 1, 1], [], []>} : vector<2x128xbf16>, vector<128x128xbf16>, vector<2x128xf32> -> vector<2x128xf32>
      %47 = arith.truncf %43 : vector<2x128xf32> to vector<2x128xbf16>
      %c0_26 = arith.constant 0 : index
      %c0_27 = arith.constant 0 : index
      %48 = vector.load %arg9[%c0_26, %c0_27] : memref<128x128xbf16, #tpu.memory_space<vmem>>, vector<128x128xbf16>
      %cst_28 = arith.constant dense<0.000000e+00> : vector<2x128xf32>
      %49 = tpu.matmul %47, %48, %cst_28 {dimension_numbers = #tpu.dot_dimension_numbers<[1], [0], [0], [1], [0, 0, 1, 1], [], []>} : vector<2x128xbf16>, vector<128x128xbf16>, vector<2x128xf32> -> vector<2x128xf32>
      %50 = arith.addf %46, %49 : vector<2x128xf32>
      %c0_29 = arith.constant 0 : index
      %c0_30 = arith.constant 0 : index
      %51 = vector.load %arg10[%c0_29, %c0_30] : memref<1x128xf32, #tpu.memory_space<vmem>>, vector<1x128xf32>
      %52 = vector.broadcast %51 : vector<1x128xf32> to vector<2x128xf32>
      %53 = arith.addf %50, %52 : vector<2x128xf32>
      %c0_31 = arith.constant 0 : index
      %c0_32 = arith.constant 0 : index
      %54 = vector.load %arg11[%c0_31, %c0_32] : memref<2x128xf32, #tpu.memory_space<vmem>>, vector<2x128xf32>
      tpu.vector_store %arg11[%c0_31, %c0_32], %53 {strides = array<i32>} : memref<2x128xf32, #tpu.memory_space<vmem>>, vector<2x128xf32>,
    } else {
    }
    return
  }
  func.func @transform_0(%arg0: i32, %arg1: i32) -> (i32, i32, i32) {
    %c0_i32 = arith.constant 0 : i32
    %c0_i32_0 = arith.constant 0 : i32
    return %arg0, %arg1, %c0_i32 : i32, i32, i32
  }
  func.func @transform_1(%arg0: i32, %arg1: i32) -> (i32, i32) {
    %c0_i32 = arith.constant 0 : i32
    %c0_i32_0 = arith.constant 0 : i32
    return %arg0, %c0_i32 : i32, i32
  }
  func.func @transform_2(%arg0: i32, %arg1: i32) -> (i32, i32) {
    %c0_i32 = arith.constant 0 : i32
    %c0_i32_0 = arith.constant 0 : i32
    %c0_i32_1 = arith.constant 0 : i32
    return %c0_i32, %c0_i32_0 : i32, i32
  }
  func.func @transform_3(%arg0: i32, %arg1: i32) -> (i32, i32) {
    %c0_i32 = arith.constant 0 : i32
    %c0_i32_0 = arith.constant 0 : i32
    %c0_i32_1 = arith.constant 0 : i32
    return %c0_i32, %c0_i32_0 : i32, i32
  }
  func.func @transform_4(%arg0: i32, %arg1: i32) -> (i32, i32) {
    %c0_i32 = arith.constant 0 : i32
    %c0_i32_0 = arith.constant 0 : i32
    %c0_i32_1 = arith.constant 0 : i32
    return %c0_i32, %c0_i32_0 : i32, i32
  }
  func.func @transform_5(%arg0: i32, %arg1: i32) -> (i32, i32) {
    %c0_i32 = arith.constant 0 : i32
    %c0_i32_0 = arith.constant 0 : i32
    %c0_i32_1 = arith.constant 0 : i32
    return %c0_i32, %c0_i32_0 : i32, i32
  }
  func.func @transform_6(%arg0: i32, %arg1: i32) -> (i32, i32) {
    %c0_i32 = arith.constant 0 : i32
    %c0_i32_0 = arith.constant 0 : i32
    %c0_i32_1 = arith.constant 0 : i32
    return %c0_i32, %c0_i32_0 : i32, i32
  }
  func.func @transform_7(%arg0: i32, %arg1: i32) -> (i32, i32) {
    %c0_i32 = arith.constant 0 : i32
    %c0_i32_0 = arith.constant 0 : i32
    %c0_i32_1 = arith.constant 0 : i32
    return %c0_i32, %c0_i32_0 : i32, i32
  }
  func.func @transform_8(%arg0: i32, %arg1: i32) -> (i32, i32) {
    %c0_i32 = arith.constant 0 : i32
    %c0_i32_0 = arith.constant 0 : i32
    %c0_i32_1 = arith.constant 0 : i32
    return %c0_i32, %c0_i32_0 : i32, i32
  }
  func.func @transform_9(%arg0: i32, %arg1: i32) -> (i32, i32) {
    %c0_i32 = arith.constant 0 : i32
    %c0_i32_0 = arith.constant 0 : i32
    return %arg0, %c0_i32 : i32, i32
  }
}

</mosaic_0001>

<llo_original>
// kernel: tpu_custom_call.1
$region0: #{tpu_custom_call.1}
  #allocation0 [shape = 'u32[]', space=smem, size = 0x4, offset = 0x4, fixed_abs, tag = 'smem constant byte address 0x4 - core index']
  #allocation1 [shape = 'u32[144,128]{1,0:T(1,128)}', space=vmem, size = 0x12000, scoped, tag = 'internal scratch']
  #allocation2 [shape = 'f32[2,32]{1,0:T(2,128)}', space=vmem, size = 0x400, scoped, tag = 'scratch operand']
  %s0 = inlined_call_operand.hbm [shape: bf16[2,8,32], index: 0, kind: input, shape index: {}]
  %s1 = inlined_call_operand.hbm [shape: f32[2,3], index: 1, kind: input, shape index: {}]
  %s2 = inlined_call_operand.hbm [shape: bf16[32,128], index: 2, kind: input, shape index: {}]
  %s3 = inlined_call_operand.vmem [shape: f32[1,128], index: 3, kind: input, shape index: {}]
  %s4 = inlined_call_operand.vmem [shape: f32[3,128], index: 4, kind: input, shape index: {}]
  %s5 = inlined_call_operand.vmem [shape: f32[1,128], index: 5, kind: input, shape index: {}]
  %s6 = inlined_call_operand.hbm [shape: bf16[128,128], index: 6, kind: input, shape index: {}]
  %s7 = inlined_call_operand.hbm [shape: bf16[128,128], index: 7, kind: input, shape index: {}]
  %s8 = inlined_call_operand.vmem [shape: f32[1,128], index: 8, kind: input, shape index: {}]
  %s9 = inlined_call_operand.hbm [shape: f32[2,128], index: 9, kind: output, shape index: {}]
  %s10 = sld [smem:[#allocation0]]
  $region74: #{tpu_custom_call.1} parent=0
    _
  %s12 = ssub.s32 1, %s10
  %s13 = scalar_select 0, %s12, %s10
  $region1: #{tpu_custom_call.1} parent=0
    #allocation3 [shape = 'u8[4096]{0}', space=vmem, size = 0x1000, scoped, tag = 'input window, operand 0, single buffered']
    #allocation4 [shape = 's32[1]{0}', space=sflag, size = 0x4, scoped, tag = 'scoped memory for tpu_custom_call.1']
    #allocation5 [shape = 's32[1]{0}', space=sflag, size = 0x4, scoped, tag = 'scoped memory for tpu_custom_call.1']
    #allocation6 [shape = 'u8[1024]{0}', space=vmem, size = 0x400, scoped, tag = 'input window, operand 1, single buffered']
    #allocation7 [shape = 's32[1]{0}', space=sflag, size = 0x4, scoped, tag = 'scoped memory for tpu_custom_call.1']
    #allocation8 [shape = 'u8[8192]{0}', space=vmem, size = 0x2000, scoped, tag = 'input window, operand 2, single buffered']
    #allocation9 [shape = 'u8[32768]{0}', space=vmem, size = 0x8000, scoped, tag = 'input window, operand 6, single buffered']
    #allocation10 [shape = 's32[1]{0}', space=sflag, size = 0x4, scoped, tag = 'scoped memory for tpu_custom_call.1']
    #allocation11 [shape = 'u8[32768]{0}', space=vmem, size = 0x8000, scoped, tag = 'input window, operand 7, single buffered']
    #allocation12 [shape = 'u8[1024]{0}', space=vmem, size = 0x400, scoped, tag = 'output window, operand 0, single buffered']
    %14 = vsyncpa [#allocation4], 0
    %15 = vsyncpa [#allocation7], 0
    %16 = vsyncpa [#allocation10], 0
    %17 = vsyncpa [#allocation5], 0
    // Predicated region
    $region2: #{tpu_custom_call.1} parent=1 // pred_check
      _
    $region3: #{tpu_custom_call.1} parent=1 // pred_check_branch
      %19 = sbr.rel (0) target = $region5
    $region4: #{tpu_custom_call.1} parent=1 // pred_region
      %s21 = ssub.s32 128, 128
      %22 = vsyncadd [#allocation4], %s21
      %s23 = sshll.u32 [#allocation3], 4
      %s24 = int_to_ptr.vmem [resolvable:$true] %s23
      %29 = dma.hbm_to_vmem [thread:$0]  %s0, 128, %s24, [#allocation4], 64, 64, 4
    $region5: #{tpu_custom_call.1} parent=1 // pred_fallthru
      _
    // Predicated region
    $region6: #{tpu_custom_call.1} parent=1 // pred_check
      _
    $region7: #{tpu_custom_call.1} parent=1 // pred_check_branch
      %31 = sbr.rel (0) target = $region9
    $region8: #{tpu_custom_call.1} parent=1 // pred_region
      %s33 = ssub.s32 32, 32
      %34 = vsyncadd [#allocation7], %s33
      %s36 = sshll.u32 [#allocation6], 4
      %s37 = int_to_ptr.vmem [resolvable:$true] %s36
      %39 = dma.hbm_to_vmem [thread:$0]  %s1, 32, %s37, [#allocation7]
    $region9: #{tpu_custom_call.1} parent=1 // pred_fallthru
      _
    // Predicated region
    $region10: #{tpu_custom_call.1} parent=1 // pred_check
      _
    $region11: #{tpu_custom_call.1} parent=1 // pred_check_branch
      %41 = sbr.rel (0) target = $region13
    $region12: #{tpu_custom_call.1} parent=1 // pred_region
      %s43 = ssub.s32 256, 256
      %44 = vsyncadd [#allocation7], %s43
      %s45 = sshll.u32 [#allocation8], 4
      %s46 = int_to_ptr.vmem [resolvable:$true] %s45
      %51 = dma.hbm_to_vmem [thread:$0]  %s2, 256, %s46, [#allocation7], 64, 64, 4
    $region13: #{tpu_custom_call.1} parent=1 // pred_fallthru
      _
    // Predicated region
    $region14: #{tpu_custom_call.1} parent=1 // pred_check
      _
    $region15: #{tpu_custom_call.1} parent=1 // pred_check_branch
      %53 = sbr.rel (0) target = $region17
    $region16: #{tpu_custom_call.1} parent=1 // pred_region
      _
    $region17: #{tpu_custom_call.1} parent=1 // pred_fallthru
      _
    // Predicated region
    $region18: #{tpu_custom_call.1} parent=1 // pred_check
      _
    $region19: #{tpu_custom_call.1} parent=1 // pred_check_branch
      %55 = sbr.rel (0) target = $region21
    $region20: #{tpu_custom_call.1} parent=1 // pred_region
      _
    $region21: #{tpu_custom_call.1} parent=1 // pred_fallthru
      _
    // Predicated region
    $region22: #{tpu_custom_call.1} parent=1 // pred_check
      _
    $region23: #{tpu_custom_call.1} parent=1 // pred_check_branch
      %57 = sbr.rel (0) target = $region25
    $region24: #{tpu_custom_call.1} parent=1 // pred_region
      _
    $region25: #{tpu_custom_call.1} parent=1 // pred_fallthru
      _
    // Predicated region
    $region26: #{tpu_custom_call.1} parent=1 // pred_check
      _
    $region27: #{tpu_custom_call.1} parent=1 // pred_check_branch
      %59 = sbr.rel (0) target = $region29
    $region28: #{tpu_custom_call.1} parent=1 // pred_region
      %s61 = ssub.s32 1024, 1024
      %62 = vsyncadd [#allocation10], %s61
      %s63 = sshll.u32 [#allocation9], 4
      %s64 = int_to_ptr.vmem [resolvable:$true] %s63
      %69 = dma.hbm_to_vmem [thread:$0]  %s6, 1024, %s64, [#allocation10], 64, 64, 4
    $region29: #{tpu_custom_call.1} parent=1 // pred_fallthru
      _
    // Predicated region
    $region30: #{tpu_custom_call.1} parent=1 // pred_check
      _
    $region31: #{tpu_custom_call.1} parent=1 // pred_check_branch
      %71 = sbr.rel (0) target = $region33
    $region32: #{tpu_custom_call.1} parent=1 // pred_region
      %s73 = ssub.s32 1024, 1024
      %74 = vsyncadd [#allocation10], %s73
      %s75 = sshll.u32 [#allocation11], 4
      %s76 = int_to_ptr.vmem [resolvable:$true] %s75
      %81 = dma.hbm_to_vmem [thread:$0]  %s7, 1024, %s76, [#allocation10], 64, 64, 4
    $region33: #{tpu_custom_call.1} parent=1 // pred_fallthru
      _
    // Predicated region
    $region34: #{tpu_custom_call.1} parent=1 // pred_check
      _
    $region35: #{tpu_custom_call.1} parent=1 // pred_check_branch
      %83 = sbr.rel (0) target = $region37
    $region36: #{tpu_custom_call.1} parent=1 // pred_region
      _
    $region37: #{tpu_custom_call.1} parent=1 // pred_fallthru
      _
    // Predicated region
    $region38: #{tpu_custom_call.1} parent=1 // pred_check
      _
    $region39: #{tpu_custom_call.1} parent=1 // pred_check_branch
      %85 = sbr.rel (0) target = $region41
    $region40: #{tpu_custom_call.1} parent=1 // pred_region
      %86 = dma.done [#allocation4], 128
    $region41: #{tpu_custom_call.1} parent=1 // pred_fallthru
      _
    // Predicated region
    $region42: #{tpu_custom_call.1} parent=1 // pred_check
      _
    $region43: #{tpu_custom_call.1} parent=1 // pred_check_branch
      %88 = sbr.rel (0) target = $region45
    $region44: #{tpu_custom_call.1} parent=1 // pred_region
      %89 = dma.done [#allocation7], 32
    $region45: #{tpu_custom_call.1} parent=1 // pred_fallthru
      _
    // Predicated region
    $region46: #{tpu_custom_call.1} parent=1 // pred_check
      _
    $region47: #{tpu_custom_call.1} parent=1 // pred_check_branch
      %91 = sbr.rel (0) target = $region49
    $region48: #{tpu_custom_call.1} parent=1 // pred_region
      %92 = dma.done [#allocation7], 256
    $region49: #{tpu_custom_call.1} parent=1 // pred_fallthru
      _
    // Predicated region
    $region50: #{tpu_custom_call.1} parent=1 // pred_check
      _
    $region51: #{tpu_custom_call.1} parent=1 // pred_check_branch
      %94 = sbr.rel (0) target = $region53
    $region52: #{tpu_custom_call.1} parent=1 // pred_region
      %95 = dma.done [#allocation10], 1024
    $region53: #{tpu_custom_call.1} parent=1 // pred_fallthru
      _
    // Predicated region
    $region54: #{tpu_custom_call.1} parent=1 // pred_check
      _
    $region55: #{tpu_custom_call.1} parent=1 // pred_check_branch
      %97 = sbr.rel (0) target = $region57
    $region56: #{tpu_custom_call.1} parent=1 // pred_region
      %98 = dma.done [#allocation10], 1024
    $region57: #{tpu_custom_call.1} parent=1 // pred_fallthru
      _
    %p100 = scmp.eq.s32.totalorder 0, 0
    // Predicated region
    $region58: #{tpu_custom_call.1} parent=1 // pred_check
      %p101 = pneg %p100
    $region59: #{tpu_custom_call.1} parent=1 // pred_check_branch
      %103 = sbr.rel (%p101) target = $region61
    $region60: #{tpu_custom_call.1} parent=1 // pred_region
      %vm104 = vcmask 254976
      %105 = vst.msk [vmem:[#allocation2] sm:$0x3] %vm104, 0.0
    $region61: #{tpu_custom_call.1} parent=1 // pred_fallthru
      _
    %v106 = vld [vmem:[#allocation2] sm:$0x3]
    %v107 = vld [vmem:[#allocation3] sm:$0xf]
    %v108 = vld [vmem:[#allocation3 + $0x4] sm:$0xf]
    %v109 = vunpack.c.l.bf16 %v107
    %v110 = vunpack.c.l.bf16 %v108
    %vm111 = vcmask 261120
    %v112 = vsel %vm111, %v109, 0.0
    %v113 = vrot.slane %v112, 4
    %v114 = vadd.f32 %v112, %v113
    %v115 = vrot.slane %v114, 2
    %v116 = vadd.f32 %v114, %v115
    %v117 = vrot.slane %v116, 1
    %v118 = vadd.f32 %v116, %v117
    %v119 = vsel %vm111, %v110, 0.0
    %v120 = vrot.slane %v119, 4
    %v121 = vadd.f32 %v119, %v120
    %v122 = vrot.slane %v121, 2
    %v123 = vadd.f32 %v121, %v122
    %v124 = vrot.slane %v123, 1
    %v125 = vadd.f32 %v123, %v124
    %vm128 = vcmask 1041409
    %v129 = vsel %vm128, %v125, %v118
    %v131 = vadd.f32 %v106, %v129
    %vm132 = vcmask 254976
    %133 = vst.msk [vmem:[#allocation2] sm:$0x3] %vm132, %v131
    // Predicated region
    $region62: #{tpu_custom_call.1} parent=1 // pred_check
      %p134 = pneg %p100
    $region63: #{tpu_custom_call.1} parent=1 // pred_check_branch
      %136 = sbr.rel (%p134) target = $region65
    $region64: #{tpu_custom_call.1} parent=1 // pred_region
      %v137 = vld [vmem:[#allocation2] sm:$0x3]
      %v138 = vmul.f32 %v137, 0.125
      %v139 = vpack.c.bf16 %v138, %v138
      %v140 = vld [vmem:[#allocation8] sm:$0xf]
      %v141 = vld [vmem:[#allocation8 + $0x4] sm:$0xf]
      %v142 = vld [vmem:[#allocation8 + $0x8] sm:$0xf]
      %v143 = vld [vmem:[#allocation8 + $0xc] sm:$0xf]
      %v144 = vld [vmem:[%s3] sm:$0x1]
      %v146 = vlaneseq
      %v147 = vshrl.u32 %v146, 7
      %v148 = vsub.s32 0, %v147
      %v149 = vrot.slane %v144, %v148
      %v155 = vunpack.c.l.b16 %v140
      %v156 = vunpack.c.l.b16 %v141
      %v157 = vunpack.c.l.b16 %v142
      %v158 = vunpack.c.l.b16 %v143
      %v159 = vpack.c.b16 %v156, %v155
      %v160 = vpack.c.b16 %v158, %v157
      %v164 = vsel %vm111, %v139, 0
      %166 = vmatprep.subr.bf16.mxu0 0
      %167 = vmatpush1.bf16.msra.mxu0 0
      %168 = vmatprep.subr.bf16.mxu0 0
      %169 = vmatpush1.bf16.msra.mxu0 0
      %170 = vmatprep.subr.bf16.mxu0 0
      %171 = vmatpush1.bf16.msra.mxu0 0
      %172 = vmatprep.subr.bf16.mxu0 0
      %173 = vmatpush1.bf16.msra.mxu0 0
      %174 = vmatprep.subr.bf16.mxu0 0
      %175 = vmatpush1.bf16.msra.mxu0 0
      %176 = vmatprep.subr.bf16.mxu0 0
      %177 = vmatpush1.bf16.msra.mxu0 0
      %178 = vmatprep.subr.bf16.mxu0 0
      %179 = vmatpush1.bf16.msra.mxu0 %v160
      %180 = vmatprep.subr.bf16.mxu0 0
      %181 = vmatpush1.bf16.msra.mxu0 %v159
      %182 = vmatprep.subr.bf16.mxu0 0
      %183 = vmatpush2.bf16.msra.mxu0 0
      %184 = vmatprep.subr.bf16.mxu0 0
      %185 = vmatpush2.bf16.msra.mxu0 0
      %186 = vmatprep.subr.bf16.mxu0 0
      %187 = vmatpush2.bf16.msra.mxu0 0
      %188 = vmatprep.subr.bf16.mxu0 0
      %189 = vmatpush2.bf16.msra.mxu0 0
      %190 = vmatprep.subr.bf16.mxu0 0
      %191 = vmatpush2.bf16.msra.mxu0 0
      %192 = vmatprep.subr.bf16.mxu0 0
      %193 = vmatpush2.bf16.msra.mxu0 0
      %194 = vmatprep.subr.bf16.mxu0 0
      %195 = vmatpush2.bf16.msra.mxu0 0
      %196 = vmatprep.subr.bf16.mxu0 0
      %197 = vmatpush2.bf16.msra.mxu0 0
      %198 = vmatprep.mubr.bf16.mxu0 0
      %199 = vmatmul.mubr.bf16.gmra.mxu0 %v164
      %v200 = vpop.f32.mrf.mxu0
      %v201 = vadd.f32 %v149, %v200
      %v202 = vpop.f32.mrf.mxu0
      %v203 = vpop.f32.mrf.mxu0
      %v204 = vpop.f32.mrf.mxu0
      %205 = vdwg.mxu0
      %v206 = vld [vmem:[#allocation6] sm:$0x3]
      %v207 = vld [vmem:[%s4] sm:$0x7]
      %v208 = vld [vmem:[%s5] sm:$0x1]
      %v210 = vlaneseq
      %v211 = vshrl.u32 %v210, 7
      %v212 = vsub.s32 0, %v211
      %v213 = vrot.slane %v208, %v212
      %216 = vset.pattern.permute.xlu0 0
      %217 = vperm.xlu0 %216, %v206
      %v218 = vpop.permute.xlu0 %217
      %v220 = vlaneseq
      %v221 = vshrl.u32 %v220, 7
      %v222 = vsub.s32 0, %v221
      %v223 = vrot.slane %v207, %v222
      %v224 = vmul.f32 %v218, %v223
      %v225 = vadd.f32 %v213, %v224
      %226 = vset.pattern.permute.xlu0 1
      %227 = vperm.xlu0 %226, %v206
      %v228 = vpop.permute.xlu0 %227
      %v230 = vlaneseq
      %v231 = vshrl.u32 %v230, 7
      %v232 = vsub.s32 1, %v231
      %v233 = vrot.slane %v207, %v232
      %v234 = vmul.f32 %v228, %v233
      %v235 = vadd.f32 %v225, %v234
      %236 = vset.pattern.permute.xlu0 2
      %237 = vperm.xlu0 %236, %v206
      %v238 = vpop.permute.xlu0 %237
      %v240 = vlaneseq
      %v241 = vshrl.u32 %v240, 7
      %v242 = vsub.s32 2, %v241
      %v243 = vrot.slane %v207, %v242
      %v244 = vmul.f32 %v238, %v243
      %v245 = vadd.f32 %v235, %v244
      %v246 = vpack.c.bf16 %v201, %v201
      %v247 = vld [vmem:[#allocation9] sm:$0xf]
      %v248 = vld [vmem:[#allocation9 + $0x4] sm:$0xf]
      %v249 = vld [vmem:[#allocation9 + $0x8] sm:$0xf]
      %v250 = vld [vmem:[#allocation9 + $0xc] sm:$0xf]
      %v251 = vld [vmem:[#allocation9 + $0x10] sm:$0xf]
      %v252 = vld [vmem:[#allocation9 + $0x14] sm:$0xf]
      %v253 = vld [vmem:[#allocation9 + $0x18] sm:$0xf]
      %v254 = vld [vmem:[#allocation9 + $0x1c] sm:$0xf]
      %v255 = vld [vmem:[#allocation9 + $0x20] sm:$0xf]
      %v256 = vld [vmem:[#allocation9 + $0x24] sm:$0xf]
      %v257 = vld [vmem:[#allocation9 + $0x28] sm:$0xf]
      %v258 = vld [vmem:[#allocation9 + $0x2c] sm:$0xf]
      %v259 = vld [vmem:[#allocation9 + $0x30] sm:$0xf]
      %v260 = vld [vmem:[#allocation9 + $0x34] sm:$0xf]
      %v261 = vld [vmem:[#allocation9 + $0x38] sm:$0xf]
      %v262 = vld [vmem:[#allocation9 + $0x3c] sm:$0xf]
      %v263 = vpack.c.bf16 %v245, %v245
      %v264 = vld [vmem:[#allocation11] sm:$0xf]
      %v265 = vld [vmem:[#allocation11 + $0x4] sm:$0xf]
      %v266 = vld [vmem:[#allocation11 + $0x8] sm:$0xf]
      %v267 = vld [vmem:[#allocation11 + $0xc] sm:$0xf]
      %v268 = vld [vmem:[#allocation11 + $0x10] sm:$0xf]
      %v269 = vld [vmem:[#allocation11 + $0x14] sm:$0xf]
      %v270 = vld [vmem:[#allocation11 + $0x18] sm:$0xf]
      %v271 = vld [vmem:[#allocation11 + $0x1c] sm:$0xf]
      %v272 = vld [vmem:[#allocation11 + $0x20] sm:$0xf]
      %v273 = vld [vmem:[#allocation11 + $0x24] sm:$0xf]
      %v274 = vld [vmem:[#allocation11 + $0x28] sm:$0xf]
      %v275 = vld [vmem:[#allocation11 + $0x2c] sm:$0xf]
      %v276 = vld [vmem:[#allocation11 + $0x30] sm:$0xf]
      %v277 = vld [vmem:[#allocation11 + $0x34] sm:$0xf]
      %v278 = vld [vmem:[#allocation11 + $0x38] sm:$0xf]
      %v279 = vld [vmem:[#allocation11 + $0x3c] sm:$0xf]
      %v296 = vunpack.c.l.b16 %v264
      %v297 = vunpack.c.l.b16 %v265
      %v298 = vunpack.c.l.b16 %v266
      %v299 = vunpack.c.l.b16 %v267
      %v300 = vunpack.c.l.b16 %v268
      %v301 = vunpack.c.l.b16 %v269
      %v302 = vunpack.c.l.b16 %v270
      %v303 = vunpack.c.l.b16 %v271
      %v304 = vunpack.c.l.b16 %v272
      %v305 = vunpack.c.l.b16 %v273
      %v306 = vunpack.c.l.b16 %v274
      %v307 = vunpack.c.l.b16 %v275
      %v308 = vunpack.c.l.b16 %v276
      %v309 = vunpack.c.l.b16 %v277
      %v310 = vunpack.c.l.b16 %v278
      %v311 = vunpack.c.l.b16 %v279
      %v312 = vpack.c.b16 %v297, %v296
      %v313 = vpack.c.b16 %v299, %v298
      %v314 = vpack.c.b16 %v301, %v300
      %v315 = vpack.c.b16 %v303, %v302
      %v316 = vpack.c.b16 %v305, %v304
      %v317 = vpack.c.b16 %v307, %v306
      %v318 = vpack.c.b16 %v309, %v308
      %v319 = vpack.c.b16 %v311, %v310
      %328 = vmatprep.subr.bf16.mxu0 0
      %329 = vmatpush1.bf16.msra.mxu0 %v319
      %330 = vmatprep.subr.bf16.mxu0 0
      %331 = vmatpush1.bf16.msra.mxu0 %v318
      %332 = vmatprep.subr.bf16.mxu0 0
      %333 = vmatpush1.bf16.msra.mxu0 %v317
      %334 = vmatprep.subr.bf16.mxu0 0
      %335 = vmatpush1.bf16.msra.mxu0 %v316
      %336 = vmatprep.subr.bf16.mxu0 0
      %337 = vmatpush1.bf16.msra.mxu0 %v315
      %338 = vmatprep.subr.bf16.mxu0 0
      %339 = vmatpush1.bf16.msra.mxu0 %v314
      %340 = vmatprep.subr.bf16.mxu0 0
      %341 = vmatpush1.bf16.msra.mxu0 %v313
      %342 = vmatprep.subr.bf16.mxu0 0
      %343 = vmatpush1.bf16.msra.mxu0 %v312
      %344 = vmatprep.subr.bf16.mxu0 0
      %345 = vmatpush2.bf16.msra.mxu0 0
      %346 = vmatprep.subr.bf16.mxu0 0
      %347 = vmatpush2.bf16.msra.mxu0 0
      %348 = vmatprep.subr.bf16.mxu0 0
      %349 = vmatpush2.bf16.msra.mxu0 0
      %350 = vmatprep.subr.bf16.mxu0 0
      %351 = vmatpush2.bf16.msra.mxu0 0
      %352 = vmatprep.subr.bf16.mxu0 0
      %353 = vmatpush2.bf16.msra.mxu0 0
      %354 = vmatprep.subr.bf16.mxu0 0
      %355 = vmatpush2.bf16.msra.mxu0 0
      %356 = vmatprep.subr.bf16.mxu0 0
      %357 = vmatpush2.bf16.msra.mxu0 0
      %358 = vmatprep.subr.bf16.mxu0 0
      %359 = vmatpush2.bf16.msra.mxu0 0
      %360 = vmatprep.mubr.bf16.mxu0 0
      %361 = vmatmul.mubr.bf16.gmra.mxu0 %v263
      %v362 = vpop.f32.mrf.mxu0
      %v363 = vadd.f32 0.0, %v362
      %v364 = vpop.f32.mrf.mxu0
      %v365 = vpop.f32.mrf.mxu0
      %v366 = vpop.f32.mrf.mxu0
      %367 = vdwg.mxu0
      %v384 = vunpack.c.l.b16 %v247
      %v385 = vunpack.c.l.b16 %v248
      %v386 = vunpack.c.l.b16 %v249
      %v387 = vunpack.c.l.b16 %v250
      %v388 = vunpack.c.l.b16 %v251
      %v389 = vunpack.c.l.b16 %v252
      %v390 = vunpack.c.l.b16 %v253
      %v391 = vunpack.c.l.b16 %v254
      %v392 = vunpack.c.l.b16 %v255
      %v393 = vunpack.c.l.b16 %v256
      %v394 = vunpack.c.l.b16 %v257
      %v395 = vunpack.c.l.b16 %v258
      %v396 = vunpack.c.l.b16 %v259
      %v397 = vunpack.c.l.b16 %v260
      %v398 = vunpack.c.l.b16 %v261
      %v399 = vunpack.c.l.b16 %v262
      %v400 = vpack.c.b16 %v385, %v384
      %v401 = vpack.c.b16 %v387, %v386
      %v402 = vpack.c.b16 %v389, %v388
      %v403 = vpack.c.b16 %v391, %v390
      %v404 = vpack.c.b16 %v393, %v392
      %v405 = vpack.c.b16 %v395, %v394
      %v406 = vpack.c.b16 %v397, %v396
      %v407 = vpack.c.b16 %v399, %v398
      %416 = vmatprep.subr.bf16.mxu0 0
      %417 = vmatpush1.bf16.msra.mxu0 %v407
      %418 = vmatprep.subr.bf16.mxu0 0
      %419 = vmatpush1.bf16.msra.mxu0 %v406
      %420 = vmatprep.subr.bf16.mxu0 0
      %421 = vmatpush1.bf16.msra.mxu0 %v405
      %422 = vmatprep.subr.bf16.mxu0 0
      %423 = vmatpush1.bf16.msra.mxu0 %v404
      %424 = vmatprep.subr.bf16.mxu0 0
      %425 = vmatpush1.bf16.msra.mxu0 %v403
      %426 = vmatprep.subr.bf16.mxu0 0
      %427 = vmatpush1.bf16.msra.mxu0 %v402
      %428 = vmatprep.subr.bf16.mxu0 0
      %429 = vmatpush1.bf16.msra.mxu0 %v401
      %430 = vmatprep.subr.bf16.mxu0 0
      %431 = vmatpush1.bf16.msra.mxu0 %v400
      %432 = vmatprep.subr.bf16.mxu0 0
      %433 = vmatpush2.bf16.msra.mxu0 0
      %434 = vmatprep.subr.bf16.mxu0 0
      %435 = vmatpush2.bf16.msra.mxu0 0
      %436 = vmatprep.subr.bf16.mxu0 0
      %437 = vmatpush2.bf16.msra.mxu0 0
      %438 = vmatprep.subr.bf16.mxu0 0
      %439 = vmatpush2.bf16.msra.mxu0 0
      %440 = vmatprep.subr.bf16.mxu0 0
      %441 = vmatpush2.bf16.msra.mxu0 0
      %442 = vmatprep.subr.bf16.mxu0 0
      %443 = vmatpush2.bf16.msra.mxu0 0
      %444 = vmatprep.subr.bf16.mxu0 0
      %445 = vmatpush2.bf16.msra.mxu0 0
      %446 = vmatprep.subr.bf16.mxu0 0
      %447 = vmatpush2.bf16.msra.mxu0 0
      %448 = vmatprep.mubr.bf16.mxu0 0
      %449 = vmatmul.mubr.bf16.gmra.mxu0 %v246
      %v450 = vpop.f32.mrf.mxu0
      %v451 = vadd.f32 %v363, %v450
      %v452 = vpop.f32.mrf.mxu0
      %v453 = vpop.f32.mrf.mxu0
      %v454 = vpop.f32.mrf.mxu0
      %455 = vdwg.mxu0
      %v456 = vld [vmem:[%s8] sm:$0x1]
      %v458 = vlaneseq
      %v459 = vshrl.u32 %v458, 7
      %v460 = vsub.s32 0, %v459
      %v461 = vrot.slane %v456, %v460
      %v463 = vadd.f32 %v451, %v461
      %464 = vst [vmem:[#allocation12] sm:$0x3] %v463
    $region65: #{tpu_custom_call.1} parent=1 // pred_fallthru
      _
    // Predicated region
    $region66: #{tpu_custom_call.1} parent=1 // pred_check
      _
    $region67: #{tpu_custom_call.1} parent=1 // pred_check_branch
      %466 = sbr.rel (0) target = $region69
    $region68: #{tpu_custom_call.1} parent=1 // pred_region
      %s468 = ssub.s32 32, 32
      %469 = vsyncadd [#allocation5], %s468
      %s471 = sshll.u32 [#allocation12], 4
      %s472 = int_to_ptr.vmem [resolvable:$true] %s471
      %474 = dma.vmem_to_hbm [thread:$0]  %s472, 32, %s9, [#allocation5]
    $region69: #{tpu_custom_call.1} parent=1 // pred_fallthru
      _
    // Predicated region
    $region70: #{tpu_custom_call.1} parent=1 // pred_check
      _
    $region71: #{tpu_custom_call.1} parent=1 // pred_check_branch
      %476 = sbr.rel (0) target = $region73
    $region72: #{tpu_custom_call.1} parent=1 // pred_region
      %477 = dma.done [#allocation5], 32
    $region73: #{tpu_custom_call.1} parent=1 // pred_fallthru
      _
    %478 = vsyncpa [#allocation4], 1
    %479 = vsyncpa [#allocation7], 1
    %480 = vsyncpa [#allocation10], 1
    %481 = vsyncpa [#allocation5], 1

</llo_original>
